<compile_context>
chip_gen: v6e
topology: v6e:2x2x1
jax: 0.10.0
libtpu: 0.0.40
codegen_flags: <defaults>
</compile_context>

<pallas_src>
import functools

import jax
import jax.numpy as jnp
from jax.experimental import pallas as pl
from jax.experimental.pallas import tpu as pltpu

_LANE = 128                          # vreg lane width
_SUBLANE = 8                         # vreg sublane count
_VMEM_TILE_BUDGET = 40 * 1024 * 1024  # per-tile working-set cap (fits v7x 64 MiB)
_VMEM_LIMIT_BYTES = 48 * 1024 * 1024  # raised scoped-VMEM limit (< v7x physical)


def _round_up(n, m):
    return ((n + m - 1) // m) * m


def _classifier_kernel(seed_ref, x_ref, w_ref, b_ref, o_ref, *, p, training):
    """One batch tile: dropout(x) @ W_t + b (W_t pre-transposed, L lane-padded)."""
    x = x_ref[...]                                       # [TB, H], stream dtype

    if training and p > 0.0:
        if p >= 1.0:
            # Drop everything; avoids threshold wraparound at p == 1.
            x = jnp.zeros_like(x)
        else:
            # Mix the batch-tile id into the seed -> independent per-tile masks.
            pltpu.prng_seed(seed_ref[0], pl.program_id(0))
            bits = pltpu.bitcast(pltpu.prng_random_bits(x.shape), jnp.uint32)
            # Clamp: p just below 1.0 must not round the threshold to 2**32.
            threshold = jnp.uint32(min(int(p * float(2 ** 32)), 2 ** 32 - 1))
            keep = (bits >= threshold).astype(x.dtype)   # P(keep) = 1 - p
            x = x * keep                                  # 0/1 mask multiply

    # [TB, H] @ [H, L_pad] -> [TB, L_pad] on the MXU, f32 accumulation.
    out = jnp.dot(x, w_ref[...], preferred_element_type=jnp.float32)

    if training and 0.0 < p < 1.0:
        # Inverted-dropout scale folded into the (much smaller) matmul output.
        out = out * jnp.float32(1.0 / (1.0 - p))

    out = out + b_ref[...].astype(jnp.float32)           # [1, L_pad] broadcast
    o_ref[...] = out.astype(o_ref.dtype)


def prepare_classifier_params(w, b, *, param_dtype=jnp.bfloat16):
    """One-time layout prep (hoisted out of the per-call forward).

    nn.Linear weight [L, H] -> resident MXU layout [H, L_pad] in param_dtype;
    bias [L] -> [1, L_pad] f32. Cache the results and reuse across forwards.
    """
    L, H = w.shape
    assert b.shape == (L,)
    L_pad = _round_up(max(L, 1), _LANE)
    w_t = (jnp.zeros((H, L_pad), dtype=param_dtype)
           .at[:, :L].set(w.T.astype(param_dtype)))
    b_pad = (jnp.zeros((1, L_pad), dtype=jnp.float32)
             .at[0, :L].set(b.astype(jnp.float32)))
    return w_t, b_pad, L


def bert_classifier_forward(x, w_t, b_pad, num_labels, *, p=0.1, training=False,
                            seed=0, block_b=1024, stream_dtype=jnp.bfloat16,
                            out_dtype=None, unpad=True):
    """x: [B, H]; w_t: [H, L_pad] (from prepare_classifier_params); b_pad: [1, L_pad].

    Returns [B, num_labels] (or the padded [B, L_pad] buffer if unpad=False, to
    let the consumer slice lazily / keep the lane-dense layout).
    """
    B, H = x.shape
    Hw, L_pad = w_t.shape
    assert Hw == H and b_pad.shape == (1, L_pad) and num_labels <= L_pad

    out_dtype = x.dtype if out_dtype is None else out_dtype
    x_s = x if x.dtype == stream_dtype else x.astype(stream_dtype)

    xb = jnp.dtype(stream_dtype).itemsize
    wb = jnp.dtype(w_t.dtype).itemsize
    ob = jnp.dtype(out_dtype).itemsize

    # ---- batch-tile (TB) selection ----------------------------------------
    TB = min(int(block_b), _round_up(B, _SUBLANE))
    TB = max(_SUBLANE, (TB // _SUBLANE) * _SUBLANE)

    def vmem_est(tb):
        # double-buffered x + out streams, single-buffered resident W / bias,
        # plus one f32 matmul-result temporary; 1.25x headroom.
        core = (2 * tb * H * xb + 2 * tb * L_pad * ob
                + H * L_pad * wb + L_pad * 4 + tb * L_pad * 4)
        return int(core * 1.25)

    while TB > _SUBLANE and vmem_est(TB) > _VMEM_TILE_BUDGET:
        TB = max(_SUBLANE, ((TB // 2) // _SUBLANE) * _SUBLANE)

    # Balance tiles: even count when >1 (keeps both v7x TensorCores busy) and
    # shrink TB to ~ceil(B / n_tiles) so the ragged last block wastes little.
    n_tiles = -(-B // TB)
    if n_tiles > 1:
        if n_tiles % 2:
            n_tiles += 1
        TB = max(_SUBLANE, _round_up(-(-B // n_tiles), _SUBLANE))
        n_tiles = -(-B // TB)
    grid = (n_tiles,)

    seed_arr = jnp.array([seed], dtype=jnp.int32)
    kernel = functools.partial(_classifier_kernel, p=float(p),
                               training=bool(training))

    cost = pl.CostEstimate(
        flops=2 * B * H * L_pad,
        transcendentals=0,
        bytes_accessed=B * H * xb + B * L_pad * ob + H * L_pad * wb + L_pad * 4,
    )

    out = pl.pallas_call(
        kernel,
        out_shape=jax.ShapeDtypeStruct((B, L_pad), out_dtype),
        grid_spec=pltpu.PrefetchScalarGridSpec(
            num_scalar_prefetch=1,             # seed -> SMEM, first kernel arg
            grid=grid,
            in_specs=[
                # x is streamed tile-by-tile (double-buffered by Pallas);
                # ragged last block is masked — no host-side padding of x.
                pl.BlockSpec((TB, H), lambda i, s: (i, 0)),
                # Grid-invariant weight / bias: resident, single-buffered.
                pl.BlockSpec((H, L_pad), lambda i, s: (0, 0),
                             pipeline_mode=pl.Buffered(1)),
                pl.BlockSpec((1, L_pad), lambda i, s: (0, 0),
                             pipeline_mode=pl.Buffered(1)),
            ],
            out_specs=pl.BlockSpec((TB, L_pad), lambda i, s: (i, 0)),
        ),
        compiler_params=pltpu.CompilerParams(
            # Batch tiles are independent -> pipeline + shard across TCs.
            dimension_semantics=("parallel",),
            vmem_limit_bytes=_VMEM_LIMIT_BYTES),
        cost_estimate=cost,
    )(seed_arr, x_s, w_t, b_pad)

    if unpad:
        out = out[:, :num_labels]
    return out


if __name__ == "__main__":
    # Small shapes consistent with the module: hidden_size=32, num_labels=4.
    batch, hidden_size, num_labels = 2, 32, 4

    key = jax.random.PRNGKey(0)
    k_x, k_w = jax.random.split(key)

    x = jax.random.normal(k_x, (batch, hidden_size), dtype=jnp.float32)

    # init_bert_weights: Linear.weight ~ N(0, 0.02), Linear.bias = 0.
    w = 0.02 * jax.random.normal(k_w, (num_labels, hidden_size),
                                 dtype=jnp.float32)
    b = jnp.zeros((num_labels,), dtype=jnp.float32)

    # One-time weight layout prep (resident bf16 [H, L_pad] + f32 bias).
    w_t, b_pad, L = prepare_classifier_params(w, b)

    # Eval-mode forward (dropout = identity) -> deterministic inference.
    out = bert_classifier_forward(x, w_t, b_pad, L, p=0.1, training=False)
    out = jax.block_until_ready(out)

    assert out.shape == (batch, num_labels)
    assert out.dtype == x.dtype

    # Reference in f32 built from the same bf16-rounded operands the kernel streams.
    x_bf = x.astype(jnp.bfloat16).astype(jnp.float32)
    w_bf = w.astype(jnp.bfloat16).astype(jnp.float32)
    ref_bf = x_bf @ w_bf.T + b
    assert jnp.allclose(out, ref_bf, atol=1e-3, rtol=1e-3)

    # Sanity check against the exact f32 PyTorch-equivalent math (bf16 tolerance).
    ref_f32 = x @ w.T + b
    assert jnp.allclose(out, ref_f32, atol=3e-2, rtol=3e-2)

    print("KERNEL_OK")
</pallas_src>

<mosaic_0001>
module attributes {stable_mosaic.version = 11 : i64} {
  func.func @_classifier_kernel(%arg0: i32, %arg1: memref<1xi32, #tpu.memory_space<smem>>, %arg2: memref<8x32xbf16, #tpu.memory_space<vmem>>, %arg3: memref<32x128xbf16, #tpu.memory_space<vmem>>, %arg4: memref<1x128xf32, #tpu.memory_space<vmem>>, %arg5: memref<8x128xf32, #tpu.memory_space<vmem>>) attributes {dimension_semantics = [#tpu.dimension_semantics<parallel>], iteration_bounds = array<i64: 1>, scalar_prefetch = 1 : i64, scratch_operands = 0 : i64, tpu.core_type = #tpu.core_type<tc>, window_params = [{transform_indices = @transform_0, window_bounds = array<i64: 8, 32>}, {pipeline_mode = #tpu.pipeline_mode<synchronous>, transform_indices = @transform_1, window_bounds = array<i64: 32, 128>}, {pipeline_mode = #tpu.pipeline_mode<synchronous>, transform_indices = @transform_2, window_bounds = array<i64: 1, 128>}, {transform_indices = @transform_3, window_bounds = array<i64: 8, 128>}]} {
    %c0 = arith.constant 0 : index
    %c0_0 = arith.constant 0 : index
    %0 = vector.load %arg2[%c0, %c0_0] : memref<8x32xbf16, #tpu.memory_space<vmem>>, vector<8x32xbf16>
    %c0_1 = arith.constant 0 : index
    %c0_2 = arith.constant 0 : index
    %1 = vector.load %arg3[%c0_1, %c0_2] : memref<32x128xbf16, #tpu.memory_space<vmem>>, vector<32x128xbf16>
    %cst = arith.constant dense<0.000000e+00> : vector<8x128xf32>
    %2 = tpu.matmul %0, %1, %cst {dimension_numbers = #tpu.dot_dimension_numbers<[1], [0], [0], [1], [0, 0, 1, 1], [], []>} : vector<8x32xbf16>, vector<32x128xbf16>, vector<8x128xf32> -> vector<8x128xf32>
    %c0_3 = arith.constant 0 : index
    %c0_4 = arith.constant 0 : index
    %3 = vector.load %arg4[%c0_3, %c0_4] : memref<1x128xf32, #tpu.memory_space<vmem>>, vector<1x128xf32>
    %4 = vector.broadcast %3 : vector<1x128xf32> to vector<8x128xf32>
    %5 = arith.addf %2, %4 : vector<8x128xf32>
    %c0_5 = arith.constant 0 : index
    %c0_6 = arith.constant 0 : index
    %6 = vector.load %arg5[%c0_5, %c0_6] : memref<8x128xf32, #tpu.memory_space<vmem>>, vector<8x128xf32>
    tpu.vector_store %arg5[%c0_5, %c0_6], %5 {strides = array<i32>} : memref<8x128xf32, #tpu.memory_space<vmem>>, vector<8x128xf32>,
    return
  }
  func.func @transform_0(%arg0: i32, %arg1: memref<1xi32, #tpu.memory_space<smem>>) -> (i32, i32) {
    %c0_i32 = arith.constant 0 : i32
    %c0_i32_0 = arith.constant 0 : i32
    return %arg0, %c0_i32 : i32, i32
  }
  func.func @transform_1(%arg0: i32, %arg1: memref<1xi32, #tpu.memory_space<smem>>) -> (i32, i32) {
    %c0_i32 = arith.constant 0 : i32
    %c0_i32_0 = arith.constant 0 : i32
    %c0_i32_1 = arith.constant 0 : i32
    return %c0_i32, %c0_i32_0 : i32, i32
  }
  func.func @transform_2(%arg0: i32, %arg1: memref<1xi32, #tpu.memory_space<smem>>) -> (i32, i32) {
    %c0_i32 = arith.constant 0 : i32
    %c0_i32_0 = arith.constant 0 : i32
    %c0_i32_1 = arith.constant 0 : i32
    return %c0_i32, %c0_i32_0 : i32, i32
  }
  func.func @transform_3(%arg0: i32, %arg1: memref<1xi32, #tpu.memory_space<smem>>) -> (i32, i32) {
    %c0_i32 = arith.constant 0 : i32
    %c0_i32_0 = arith.constant 0 : i32
    return %arg0, %c0_i32 : i32, i32
  }
}

</mosaic_0001>

<llo_original>
// kernel: tpu_custom_call.1
$region0: #{tpu_custom_call.1}
  #allocation0 [shape = 'u32[]', space=smem, size = 0x4, offset = 0x4, fixed_abs, tag = 'smem constant byte address 0x4 - core index']
  #allocation1 [shape = 'u32[144,128]{1,0:T(1,128)}', space=vmem, size = 0x12000, scoped, tag = 'internal scratch']
  #allocation2 [shape = 's32[1]{0}', space=sflag, size = 0x4, scoped, tag = 'scoped memory for tpu_custom_call.1']
  #allocation3 [shape = 's32[1]{0:T(128)S(6)}', space=smem, size = 0x200, scoped, tag = 'prefetched SMEM operand 0']
  %s0 = inlined_call_operand.<no memory space> [shape: s32[1], index: 0, kind: input, shape index: {}]
  %s1 = inlined_call_operand.vmem [shape: bf16[2,32], index: 1, kind: input, shape index: {}]
  %s2 = inlined_call_operand.hbm [shape: bf16[32,128], index: 2, kind: input, shape index: {}]
  %s3 = inlined_call_operand.vmem [shape: f32[1,128], index: 3, kind: input, shape index: {}]
  %s4 = inlined_call_operand.hbm [shape: f32[2,128], index: 4, kind: output, shape index: {}]
  %s5 = sld [smem:[#allocation0]]
  $region26: #{tpu_custom_call.1} parent=0
    _
  %s7 = ssub.s32 1, %s5
  %s8 = scalar_select 0, %s7, %s5
  %9 = sst [smem:[#allocation3]] %s0
  $region1: #{tpu_custom_call.1} parent=0
    #allocation4 [shape = 'u8[8192]{0}', space=vmem, size = 0x2000, scoped, tag = 'input window, operand 2, single buffered']
    #allocation5 [shape = 's32[1]{0}', space=sflag, size = 0x4, scoped, tag = 'scoped memory for tpu_custom_call.1']
    #allocation6 [shape = 's32[1]{0}', space=sflag, size = 0x4, scoped, tag = 'scoped memory for tpu_custom_call.1']
    #allocation7 [shape = 'u8[4096]{0}', space=vmem, size = 0x1000, scoped, tag = 'output window, operand 0, single buffered']
    %10 = vsyncpa [#allocation5], 0
    %11 = vsyncpa [#allocation6], 0
    // Predicated region
    $region2: #{tpu_custom_call.1} parent=1 // pred_check
      _
    $region3: #{tpu_custom_call.1} parent=1 // pred_check_branch
      %13 = sbr.rel (0) target = $region5
    $region4: #{tpu_custom_call.1} parent=1 // pred_region
      _
    $region5: #{tpu_custom_call.1} parent=1 // pred_fallthru
      _
    // Predicated region
    $region6: #{tpu_custom_call.1} parent=1 // pred_check
      _
    $region7: #{tpu_custom_call.1} parent=1 // pred_check_branch
      %15 = sbr.rel (0) target = $region9
    $region8: #{tpu_custom_call.1} parent=1 // pred_region
      %s17 = ssub.s32 256, 256
      %18 = vsyncadd [#allocation5], %s17
      %s19 = sshll.u32 [#allocation4], 4
      %s20 = int_to_ptr.vmem [resolvable:$true] %s19
      %25 = dma.hbm_to_vmem [thread:$0]  %s2, 256, %s20, [#allocation5], 64, 64, 4
    $region9: #{tpu_custom_call.1} parent=1 // pred_fallthru
      _
    // Predicated region
    $region10: #{tpu_custom_call.1} parent=1 // pred_check
      _
    $region11: #{tpu_custom_call.1} parent=1 // pred_check_branch
      %27 = sbr.rel (0) target = $region13
    $region12: #{tpu_custom_call.1} parent=1 // pred_region
      _
    $region13: #{tpu_custom_call.1} parent=1 // pred_fallthru
      _
    // Predicated region
    $region14: #{tpu_custom_call.1} parent=1 // pred_check
      _
    $region15: #{tpu_custom_call.1} parent=1 // pred_check_branch
      %29 = sbr.rel (0) target = $region17
    $region16: #{tpu_custom_call.1} parent=1 // pred_region
      %30 = dma.done [#allocation5], 256
    $region17: #{tpu_custom_call.1} parent=1 // pred_fallthru
      _
    %v32 = vld [vmem:[%s1] sm:$0x1]
    %v33 = vld [vmem:[%s1 + $0x1] sm:$0x1]
    %v34 = vld [vmem:[%s1 + $0x2] sm:$0x1]
    %v35 = vld [vmem:[%s1 + $0x3] sm:$0x1]
    %v36 = vld [vmem:[#allocation4] sm:$0xf]
    %v37 = vld [vmem:[#allocation4 + $0x4] sm:$0xf]
    %v38 = vld [vmem:[#allocation4 + $0x8] sm:$0xf]
    %v39 = vld [vmem:[#allocation4 + $0xc] sm:$0xf]
    %v40 = vld [vmem:[%s3] sm:$0x1]
    %v42 = vlaneseq
    %v43 = vshrl.u32 %v42, 7
    %v44 = vsub.s32 0, %v43
    %v45 = vrot.slane %v40, %v44
    %v51 = vcombine.low %v32, %v33
    %v52 = vcombine.low %v34, %v35
    %v54 = vunpack.c.l.s4 1966171168
    %v55 = vunpack.c.0.s8 %v54
    %v56 = vlaneseq
    %v57 = vshrl.u32 %v56, 7
    %v58 = vsub.s32 %v55, %v57
    %v59 = vrot.slane %v51, %v58
    %v61 = vunpack.c.l.s4 1966171168
    %v62 = vunpack.c.0.s8 %v61
    %v63 = vlaneseq
    %v64 = vshrl.u32 %v63, 7
    %v65 = vsub.s32 %v62, %v64
    %v66 = vrot.slane %v52, %v65
    %v67 = vcombine.low %v59, %v66
    %v69 = vunpack.c.l.s4 1966171168
    %v70 = vunpack.c.0.s8 %v69
    %v71 = vlaneseq
    %v72 = vshrl.u32 %v71, 7
    %v73 = vsub.s32 %v70, %v72
    %v74 = vrot.slane %v67, %v73
    %v79 = vunpack.c.l.b16 %v36
    %v80 = vunpack.c.l.b16 %v37
    %v81 = vunpack.c.l.b16 %v38
    %v82 = vunpack.c.l.b16 %v39
    %v83 = vpack.c.b16 %v80, %v79
    %v84 = vpack.c.b16 %v82, %v81
    %vm87 = vcmask 261120
    %v89 = vsel %vm87, %v74, 0
    %91 = vmatprep.subr.bf16.mxu0 0
    %92 = vmatpush1.bf16.msra.mxu0 0
    %93 = vmatprep.subr.bf16.mxu0 0
    %94 = vmatpush1.bf16.msra.mxu0 0
    %95 = vmatprep.subr.bf16.mxu0 0
    %96 = vmatpush1.bf16.msra.mxu0 0
    %97 = vmatprep.subr.bf16.mxu0 0
    %98 = vmatpush1.bf16.msra.mxu0 0
    %99 = vmatprep.subr.bf16.mxu0 0
    %100 = vmatpush1.bf16.msra.mxu0 0
    %101 = vmatprep.subr.bf16.mxu0 0
    %102 = vmatpush1.bf16.msra.mxu0 0
    %103 = vmatprep.subr.bf16.mxu0 0
    %104 = vmatpush1.bf16.msra.mxu0 %v84
    %105 = vmatprep.subr.bf16.mxu0 0
    %106 = vmatpush1.bf16.msra.mxu0 %v83
    %107 = vmatprep.subr.bf16.mxu0 0
    %108 = vmatpush2.bf16.msra.mxu0 0
    %109 = vmatprep.subr.bf16.mxu0 0
    %110 = vmatpush2.bf16.msra.mxu0 0
    %111 = vmatprep.subr.bf16.mxu0 0
    %112 = vmatpush2.bf16.msra.mxu0 0
    %113 = vmatprep.subr.bf16.mxu0 0
    %114 = vmatpush2.bf16.msra.mxu0 0
    %115 = vmatprep.subr.bf16.mxu0 0
    %116 = vmatpush2.bf16.msra.mxu0 0
    %117 = vmatprep.subr.bf16.mxu0 0
    %118 = vmatpush2.bf16.msra.mxu0 0
    %119 = vmatprep.subr.bf16.mxu0 0
    %120 = vmatpush2.bf16.msra.mxu0 0
    %121 = vmatprep.subr.bf16.mxu0 0
    %122 = vmatpush2.bf16.msra.mxu0 0
    %123 = vmatprep.mubr.bf16.mxu0 0
    %124 = vmatmul.mubr.bf16.gmra.mxu0 %v89
    %v125 = vpop.f32.mrf.mxu0
    %v126 = vadd.f32 %v45, %v125
    %v127 = vpop.f32.mrf.mxu0
    %v128 = vpop.f32.mrf.mxu0
    %v129 = vpop.f32.mrf.mxu0
    %130 = vdwg.mxu0
    %131 = vst [vmem:[#allocation7] sm:$0xff] %v126
    // Predicated region
    $region18: #{tpu_custom_call.1} parent=1 // pred_check
      _
    $region19: #{tpu_custom_call.1} parent=1 // pred_check_branch
      %133 = sbr.rel (0) target = $region21
    $region20: #{tpu_custom_call.1} parent=1 // pred_region
      %s135 = ssub.s32 128, 32
      %136 = vsyncadd [#allocation6], %s135
      %s137 = sshll.u32 [#allocation7], 4
      %s138 = int_to_ptr.vmem [resolvable:$true] %s137
      %143 = dma.vmem_to_hbm [thread:$0]  %s138, 32, %s4, [#allocation6], 32, 32, 2
    $region21: #{tpu_custom_call.1} parent=1 // pred_fallthru
      _
    // Predicated region
    $region22: #{tpu_custom_call.1} parent=1 // pred_check
      _
    $region23: #{tpu_custom_call.1} parent=1 // pred_check_branch
      %145 = sbr.rel (0) target = $region25
    $region24: #{tpu_custom_call.1} parent=1 // pred_region
      %146 = dma.done [#allocation6], 128
    $region25: #{tpu_custom_call.1} parent=1 // pred_fallthru
      _
    %147 = vsyncpa [#allocation5], 1
    %148 = vsyncpa [#allocation6], 1

</llo_original>
